<compile_context>
chip_gen: v5e
topology: v5e:2x2
jax: 0.10.0
libtpu: 0.0.40
codegen_flags: <defaults>
</compile_context>

<pallas_src>
import jax
import jax.numpy as jnp
from jax.experimental import pallas as pl
from jax.experimental.pallas import tpu as pltpu


def _mlp_kernel(xt_ref, w1_ref, b1_ref, w2_ref, b2_ref, w3_ref, b3_ref, o_ref):
    # Transposed layout: batch on lanes, features on sublanes.
    xt = xt_ref[...]                                  # (2, TN)  f32
    w1 = w1_ref[...]                                  # (39, 2)

    # Layer 1: K=2 contraction -> VPU broadcast-FMA chain (skip the MXU).
    h1 = jnp.tanh(
        w1[:, 0:1] * xt[0:1, :] + w1[:, 1:2] * xt[1:2, :] + b1_ref[...]
    )                                                 # (39, TN)

    # Layer 2: K=39 contraction -> MXU.
    h2 = jnp.tanh(
        jnp.dot(
            w2_ref[...], h1,
            preferred_element_type=jnp.float32,
            precision=jax.lax.Precision.HIGHEST,
        )
        + b2_ref[...]
    )                                                 # (5, TN)

    # Layer 3: K=5, single output row -> VPU FMA chain again.
    w3 = w3_ref[...]                                  # (1, 5)
    logits = b3_ref[...] + w3[:, 0:1] * h2[0:1, :]    # (1, TN)
    for j in range(1, 5):
        logits = logits + w3[:, j:j + 1] * h2[j:j + 1, :]

    o_ref[...] = jax.nn.sigmoid(logits)               # (1, TN), lane-dense store


def _pallas_forward(x, params, *, block_n=2048):
    """Always runs the Pallas kernel. x: (N, 2) float32."""
    n = x.shape[0]

    # Weights stay in torch-native (out, in) layout; biases as column vectors.
    w1 = params["w1"]                    # (39, 2)
    b1 = params["b1"].reshape(-1, 1)     # (39, 1)
    w2 = params["w2"]                    # (5, 39)
    b2 = params["b2"].reshape(-1, 1)     # (5, 1)
    w3 = params["w3"]                    # (1, 5)
    b3 = params["b3"].reshape(-1, 1)     # (1, 1)

    # Batch goes on lanes: pad N up to a lane-dense multiple of the block.
    block_n = min(block_n, ((n + 127) // 128) * 128)
    n_pad = ((n + block_n - 1) // block_n) * block_n
    xt = jnp.pad(x.astype(jnp.float32), ((0, n_pad - n), (0, 0))).T   # (2, n_pad)

    grid = (n_pad // block_n,)

    def resident(shape):
        # Weights/biases: same block every grid step -> stays resident in VMEM.
        return pl.BlockSpec(shape, lambda i: (0, 0))

    out = pl.pallas_call(
        _mlp_kernel,
        out_shape=jax.ShapeDtypeStruct((1, n_pad), jnp.float32),
        grid=grid,
        in_specs=[
            pl.BlockSpec((2, block_n), lambda i: (0, i)),   # x (transposed)
            resident(w1.shape), resident(b1.shape),
            resident(w2.shape), resident(b2.shape),
            resident(w3.shape), resident(b3.shape),
        ],
        out_specs=pl.BlockSpec((1, block_n), lambda i: (0, i)),
        compiler_params=pltpu.CompilerParams(
            dimension_semantics=("parallel",),
        ),
    )(xt, w1, b1, w2, b2, w3, b3)

    # Drop batch padding; .squeeze() matches torch .squeeze() semantics
    # ((N,1) -> (N,) for N>1, scalar for N==1).
    return jnp.squeeze(out[0, :n])


def _reference(x, p):
    """Plain-JAX forward (identical math to the PyTorch module)."""
    h1 = jnp.tanh(x @ p["w1"].T + p["b1"])
    h2 = jnp.tanh(h1 @ p["w2"].T + p["b2"])
    y = jax.nn.sigmoid(h2 @ p["w3"].T + p["b3"])
    return jnp.squeeze(y)


def neural_network_model_forward(x, params, *, min_pallas_batch=4096, block_n=2048):
    """Dispatcher: tiny batches are launch-overhead dominated -> fused XLA;
    large batches go to the lane-dense Pallas kernel."""
    if x.shape[0] < min_pallas_batch:
        return _reference(x, params)
    return _pallas_forward(x, params, block_n=block_n)


def _init_params(key):
    """Deterministic init matching nn.Linear default (uniform +/- 1/sqrt(fan_in))."""
    def linear(key, in_f, out_f):
        kw, kb = jax.random.split(key)
        bound = 1.0 / jnp.sqrt(in_f)
        w = jax.random.uniform(kw, (out_f, in_f), jnp.float32, -bound, bound)
        b = jax.random.uniform(kb, (out_f,), jnp.float32, -bound, bound)
        return w, b

    k1, k2, k3 = jax.random.split(key, 3)
    w1, b1 = linear(k1, 2, 39)
    w2, b2 = linear(k2, 39, 5)
    w3, b3 = linear(k3, 5, 1)
    return {"w1": w1, "b1": b1, "w2": w2, "b2": b2, "w3": w3, "b3": b3}


if __name__ == "__main__":
    key = jax.random.PRNGKey(0)
    k_params, k_small, k_big = jax.random.split(key, 3)

    params = _init_params(k_params)

    # (a) Module-sized batch (8, 2): dispatcher takes the fused-XLA path.
    x_small = jax.random.uniform(k_small, (8, 2), jnp.float32, 0.0, 10.0)
    y_small = jax.block_until_ready(neural_network_model_forward(x_small, params))
    assert y_small.shape == (8,)
    assert jnp.allclose(y_small, _reference(x_small, params), atol=1e-5, rtol=1e-5)

    # (b) Exercise the Pallas kernel: non-multiple-of-128 batch, small block
    #     so the grid actually iterates (1000 -> padded to 1024, grid=(4,)).
    x_big = jax.random.uniform(k_big, (1000, 2), jnp.float32, 0.0, 10.0)
    y_big = jax.block_until_ready(_pallas_forward(x_big, params, block_n=256))
    y_ref = _reference(x_big, params)
    assert y_big.shape == (1000,)
    assert jnp.allclose(y_big, y_ref, atol=1e-5, rtol=1e-5)

    print("KERNEL_OK")
</pallas_src>

<mosaic_0001>
module attributes {stable_mosaic.version = 11 : i64} {
  func.func @_mlp_kernel(%arg0: i32, %arg1: memref<2x256xf32, #tpu.memory_space<vmem>>, %arg2: memref<39x2xf32, #tpu.memory_space<vmem>>, %arg3: memref<39x1xf32, #tpu.memory_space<vmem>>, %arg4: memref<5x39xf32, #tpu.memory_space<vmem>>, %arg5: memref<5x1xf32, #tpu.memory_space<vmem>>, %arg6: memref<1x5xf32, #tpu.memory_space<vmem>>, %arg7: memref<1x1xf32, #tpu.memory_space<vmem>>, %arg8: memref<1x256xf32, #tpu.memory_space<vmem>>) attributes {dimension_semantics = [#tpu.dimension_semantics<parallel>], iteration_bounds = array<i64: 4>, scalar_prefetch = 0 : i64, scratch_operands = 0 : i64, tpu.core_type = #tpu.core_type<tc>, window_params = [{transform_indices = @transform_0, window_bounds = array<i64: 2, 256>}, {pipeline_mode = #tpu.pipeline_mode<synchronous>, transform_indices = @transform_1, window_bounds = array<i64: 39, 2>}, {pipeline_mode = #tpu.pipeline_mode<synchronous>, transform_indices = @transform_2, window_bounds = array<i64: 39, 1>}, {pipeline_mode = #tpu.pipeline_mode<synchronous>, transform_indices = @transform_3, window_bounds = array<i64: 5, 39>}, {pipeline_mode = #tpu.pipeline_mode<synchronous>, transform_indices = @transform_4, window_bounds = array<i64: 5, 1>}, {pipeline_mode = #tpu.pipeline_mode<synchronous>, transform_indices = @transform_5, window_bounds = array<i64: 1, 5>}, {pipeline_mode = #tpu.pipeline_mode<synchronous>, transform_indices = @transform_6, window_bounds = array<i64: 1, 1>}, {transform_indices = @transform_7, window_bounds = array<i64: 1, 256>}]} {
    %c0 = arith.constant 0 : index
    %c0_0 = arith.constant 0 : index
    %0 = vector.load %arg1[%c0, %c0_0] : memref<2x256xf32, #tpu.memory_space<vmem>>, vector<2x256xf32>
    %c0_1 = arith.constant 0 : index
    %c0_2 = arith.constant 0 : index
    %1 = vector.load %arg2[%c0_1, %c0_2] : memref<39x2xf32, #tpu.memory_space<vmem>>, vector<39x2xf32>
    %2 = vector.extract_strided_slice %1 {offsets = [0, 0], sizes = [39, 1], strides = [1, 1]} : vector<39x2xf32> to vector<39x1xf32>
    %3 = vector.extract_strided_slice %0 {offsets = [0, 0], sizes = [1, 256], strides = [1, 1]} : vector<2x256xf32> to vector<1x256xf32>
    %4 = vector.broadcast %2 : vector<39x1xf32> to vector<39x256xf32>
    %5 = vector.broadcast %3 : vector<1x256xf32> to vector<39x256xf32>
    %6 = arith.mulf %4, %5 : vector<39x256xf32>
    %7 = vector.extract_strided_slice %1 {offsets = [0, 1], sizes = [39, 1], strides = [1, 1]} : vector<39x2xf32> to vector<39x1xf32>
    %8 = vector.extract_strided_slice %0 {offsets = [1, 0], sizes = [1, 256], strides = [1, 1]} : vector<2x256xf32> to vector<1x256xf32>
    %9 = vector.broadcast %7 : vector<39x1xf32> to vector<39x256xf32>
    %10 = vector.broadcast %8 : vector<1x256xf32> to vector<39x256xf32>
    %11 = arith.mulf %9, %10 : vector<39x256xf32>
    %12 = arith.addf %6, %11 : vector<39x256xf32>
    %c0_3 = arith.constant 0 : index
    %c0_4 = arith.constant 0 : index
    %13 = vector.load %arg3[%c0_3, %c0_4] : memref<39x1xf32, #tpu.memory_space<vmem>>, vector<39x1xf32>
    %14 = vector.broadcast %13 : vector<39x1xf32> to vector<39x256xf32>
    %15 = arith.addf %12, %14 : vector<39x256xf32>
    %16 = math.tanh %15 : vector<39x256xf32>
    %c0_5 = arith.constant 0 : index
    %c0_6 = arith.constant 0 : index
    %17 = vector.load %arg4[%c0_5, %c0_6] : memref<5x39xf32, #tpu.memory_space<vmem>>, vector<5x39xf32>
    %cst = arith.constant dense<0.000000e+00> : vector<5x256xf32>
    %18 = tpu.matmul %17, %16, %cst {dimension_numbers = #tpu.dot_dimension_numbers<[1], [0], [0], [1], [0, 0, 1, 1], [], []>, precision = #tpu.contract_precision<fp32>} : vector<5x39xf32>, vector<39x256xf32>, vector<5x256xf32> -> vector<5x256xf32>
    %c0_7 = arith.constant 0 : index
    %c0_8 = arith.constant 0 : index
    %19 = vector.load %arg5[%c0_7, %c0_8] : memref<5x1xf32, #tpu.memory_space<vmem>>, vector<5x1xf32>
    %20 = vector.broadcast %19 : vector<5x1xf32> to vector<5x256xf32>
    %21 = arith.addf %18, %20 : vector<5x256xf32>
    %22 = math.tanh %21 : vector<5x256xf32>
    %c0_9 = arith.constant 0 : index
    %c0_10 = arith.constant 0 : index
    %23 = vector.load %arg6[%c0_9, %c0_10] : memref<1x5xf32, #tpu.memory_space<vmem>>, vector<1x5xf32>
    %c0_11 = arith.constant 0 : index
    %c0_12 = arith.constant 0 : index
    %24 = vector.load %arg7[%c0_11, %c0_12] : memref<1x1xf32, #tpu.memory_space<vmem>>, vector<1x1xf32>
    %25 = vector.extract_strided_slice %23 {offsets = [0, 0], sizes = [1, 1], strides = [1, 1]} : vector<1x5xf32> to vector<1x1xf32>
    %26 = vector.extract_strided_slice %22 {offsets = [0, 0], sizes = [1, 256], strides = [1, 1]} : vector<5x256xf32> to vector<1x256xf32>
    %27 = vector.broadcast %25 : vector<1x1xf32> to vector<1x256xf32>
    %28 = arith.mulf %27, %26 : vector<1x256xf32>
    %29 = vector.broadcast %24 : vector<1x1xf32> to vector<1x256xf32>
    %30 = arith.addf %29, %28 : vector<1x256xf32>
    %31 = vector.extract_strided_slice %23 {offsets = [0, 1], sizes = [1, 1], strides = [1, 1]} : vector<1x5xf32> to vector<1x1xf32>
    %32 = vector.extract_strided_slice %22 {offsets = [1, 0], sizes = [1, 256], strides = [1, 1]} : vector<5x256xf32> to vector<1x256xf32>
    %33 = vector.broadcast %31 : vector<1x1xf32> to vector<1x256xf32>
    %34 = arith.mulf %33, %32 : vector<1x256xf32>
    %35 = arith.addf %30, %34 : vector<1x256xf32>
    %36 = vector.extract_strided_slice %23 {offsets = [0, 2], sizes = [1, 1], strides = [1, 1]} : vector<1x5xf32> to vector<1x1xf32>
    %37 = vector.extract_strided_slice %22 {offsets = [2, 0], sizes = [1, 256], strides = [1, 1]} : vector<5x256xf32> to vector<1x256xf32>
    %38 = vector.broadcast %36 : vector<1x1xf32> to vector<1x256xf32>
    %39 = arith.mulf %38, %37 : vector<1x256xf32>
    %40 = arith.addf %35, %39 : vector<1x256xf32>
    %41 = vector.extract_strided_slice %23 {offsets = [0, 3], sizes = [1, 1], strides = [1, 1]} : vector<1x5xf32> to vector<1x1xf32>
    %42 = vector.extract_strided_slice %22 {offsets = [3, 0], sizes = [1, 256], strides = [1, 1]} : vector<5x256xf32> to vector<1x256xf32>
    %43 = vector.broadcast %41 : vector<1x1xf32> to vector<1x256xf32>
    %44 = arith.mulf %43, %42 : vector<1x256xf32>
    %45 = arith.addf %40, %44 : vector<1x256xf32>
    %46 = vector.extract_strided_slice %23 {offsets = [0, 4], sizes = [1, 1], strides = [1, 1]} : vector<1x5xf32> to vector<1x1xf32>
    %47 = vector.extract_strided_slice %22 {offsets = [4, 0], sizes = [1, 256], strides = [1, 1]} : vector<5x256xf32> to vector<1x256xf32>
    %48 = vector.broadcast %46 : vector<1x1xf32> to vector<1x256xf32>
    %49 = arith.mulf %48, %47 : vector<1x256xf32>
    %50 = arith.addf %45, %49 : vector<1x256xf32>
    %51 = arith.negf %50 : vector<1x256xf32>
    %52 = math.exp %51 : vector<1x256xf32>
    %cst_13 = arith.constant 1.000000e+00 : f32
    %53 = vector.broadcast %cst_13 : f32 to vector<1x256xf32>
    %54 = arith.addf %53, %52 : vector<1x256xf32>
    %55 = arith.divf %53, %54 : vector<1x256xf32>
    %c0_14 = arith.constant 0 : index
    %c0_15 = arith.constant 0 : index
    %56 = vector.load %arg8[%c0_14, %c0_15] : memref<1x256xf32, #tpu.memory_space<vmem>>, vector<1x256xf32>
    tpu.vector_store %arg8[%c0_14, %c0_15], %55 {strides = array<i32>} : memref<1x256xf32, #tpu.memory_space<vmem>>, vector<1x256xf32>,
    return
  }
  func.func @transform_0(%arg0: i32) -> (i32, i32) {
    %c0_i32 = arith.constant 0 : i32
    %c0_i32_0 = arith.constant 0 : i32
    return %c0_i32, %arg0 : i32, i32
  }
  func.func @transform_1(%arg0: i32) -> (i32, i32) {
    %c0_i32 = arith.constant 0 : i32
    %c0_i32_0 = arith.constant 0 : i32
    %c0_i32_1 = arith.constant 0 : i32
    return %c0_i32, %c0_i32_0 : i32, i32
  }
  func.func @transform_2(%arg0: i32) -> (i32, i32) {
    %c0_i32 = arith.constant 0 : i32
    %c0_i32_0 = arith.constant 0 : i32
    %c0_i32_1 = arith.constant 0 : i32
    return %c0_i32, %c0_i32_0 : i32, i32
  }
  func.func @transform_3(%arg0: i32) -> (i32, i32) {
    %c0_i32 = arith.constant 0 : i32
    %c0_i32_0 = arith.constant 0 : i32
    %c0_i32_1 = arith.constant 0 : i32
    return %c0_i32, %c0_i32_0 : i32, i32
  }
  func.func @transform_4(%arg0: i32) -> (i32, i32) {
    %c0_i32 = arith.constant 0 : i32
    %c0_i32_0 = arith.constant 0 : i32
    %c0_i32_1 = arith.constant 0 : i32
    return %c0_i32, %c0_i32_0 : i32, i32
  }
  func.func @transform_5(%arg0: i32) -> (i32, i32) {
    %c0_i32 = arith.constant 0 : i32
    %c0_i32_0 = arith.constant 0 : i32
    %c0_i32_1 = arith.constant 0 : i32
    return %c0_i32, %c0_i32_0 : i32, i32
  }
  func.func @transform_6(%arg0: i32) -> (i32, i32) {
    %c0_i32 = arith.constant 0 : i32
    %c0_i32_0 = arith.constant 0 : i32
    %c0_i32_1 = arith.constant 0 : i32
    return %c0_i32, %c0_i32_0 : i32, i32
  }
  func.func @transform_7(%arg0: i32) -> (i32, i32) {
    %c0_i32 = arith.constant 0 : i32
    %c0_i32_0 = arith.constant 0 : i32
    return %c0_i32, %arg0 : i32, i32
  }
}

</mosaic_0001>

<llo_original>
// kernel: tpu_custom_call.1
$region0: #{tpu_custom_call.1}
  #allocation0 [shape = 'u32[]', space=smem, size = 0x4, offset = 0x4, fixed_abs, tag = 'smem constant byte address 0x4 - core index']
  #allocation1 [shape = 'u32[72,128]{1,0:T(1,128)}', space=vmem, size = 0x9000, scoped, tag = 'internal scratch']
  #allocation2 [shape = 'f32[1,1]{1,0:T(1,128)S(1)}', space=vmem, size = 0x200, scoped, tag = 'scoped memory for tpu_custom_call.1']
  %s0 = inlined_call_operand.vmem [shape: f32[2,1024], index: 0, kind: input, shape index: {}]
  %s1 = inlined_call_operand.vmem [shape: f32[39,2], index: 1, kind: input, shape index: {}]
  %s2 = inlined_call_operand.vmem [shape: f32[39,1], index: 2, kind: input, shape index: {}]
  %s3 = inlined_call_operand.vmem [shape: f32[5,39], index: 3, kind: input, shape index: {}]
  %s4 = inlined_call_operand.vmem [shape: f32[5,1], index: 4, kind: input, shape index: {}]
  %s5 = inlined_call_operand.vmem [shape: f32[1,5], index: 5, kind: input, shape index: {}]
  %s6 = inlined_call_operand.<no memory space> [shape: f32[1,1], index: 6, kind: input, shape index: {}]
  %s7 = inlined_call_operand.hbm [shape: f32[1,1024], index: 7, kind: output, shape index: {}]
  %s8 = sld [smem:[#allocation0]]
  $region61: #{tpu_custom_call.1} parent=0
    _
  %s10 = ssub.s32 1, %s8
  %s11 = scalar_select 0, %s10, %s8
  %v12 = vstv %s6
  %13 = vst [vmem:[#allocation2] sm:$0x1] %v12
  $region1: #{tpu_custom_call.1} parent=0
    #allocation3 [shape = 'u8[2048]{0}', space=vmem, size = 0x800, scoped, tag = 'output window, operand 0']
    #allocation4 [shape = 's32[2]{0}', space=sflag, size = 0x8, scoped, tag = 'scoped memory for tpu_custom_call.1']
    %14 = vsyncpa [#allocation4], 0
    %s15 = scalar_lea.sflag [#allocation4], 1
    %16 = vsyncpa %s15, 0
    loop: start=0, step=1, limit=6
    $region2: #{tpu_custom_call.1} parent=1 // loop_pre_header
      _
    $region3: #{tpu_custom_call.1} parent=1 // loop_header
      %s18 = sphi 0, %s22
      %p19 = scmp.ge.s32.totalorder %s18, 6
      %s28 = sphi 0, %s30
      %s31 = sphi 0, %s28
      %s32 = sphi 0, %s31
      %s48 = sphi 0, %s32
      %s52 = sphi 0, %s52
      %s54 = sphi 0, %s52
      %s55 = sphi 0, %s54
      %s69 = sphi 0, %s55
      %s73 = sphi 0, %s73
      %s75 = sphi 0, %s73
      %s76 = sphi 0, %s75
      %s90 = sphi 0, %s76
      %s94 = sphi 0, %s94
      %s96 = sphi 0, %s94
      %s97 = sphi 0, %s96
      %s111 = sphi 0, %s97
      %s115 = sphi 0, %s115
      %s117 = sphi 0, %s115
      %s118 = sphi 0, %s117
      %s132 = sphi 0, %s118
      %s136 = sphi 0, %s136
      %s138 = sphi 0, %s136
      %s139 = sphi 0, %s138
      %s153 = sphi 0, %s139
      %s157 = sphi 0, %s157
      %s159 = sphi 0, %s157
      %s160 = sphi 0, %s159
      %s174 = sphi 0, %s160
      %s180 = sphi 0, %s182
      %s183 = sphi 0, %s180
      %s184 = sphi 0, %s183
      %s200 = sphi 0, %s184
    $region4: #{tpu_custom_call.1} parent=1 // loop_header_branch
      %21 = sbr.rel (%p19) target = $region8
    $region5: #{tpu_custom_call.1} parent=1 // loop_body
      %s23 = ssub.s32 %s18, 1
      %s24 = ssub.s32 %s18, 2
      %s25 = sadd.s32 %s18, 1
      %s26 = ssub.s32 %s18, %s25
      %p27 = scmp.eq.s32.totalorder %s26, 0
      %s29 = sadd.s32 %s28, 1
      %s30 = scalar_select %p27, %s28, %s29
      %p33 = pneg %p27
      %p34 = scmp.eq.s32.totalorder %s18, 3
      %p35 = por %p33, %p34
      %p36 = scmp.ne.s32.totalorder %s28, %s31
      %p37 = scmp.eq.s32.totalorder %s18, 0
      %p38 = por %p36, %p37
      %p39 = scmp.ne.s32.totalorder %s28, %s31
      %p40 = scmp.eq.s32.totalorder %s23, 3
      %p41 = por %p39, %p40
      %p42 = scmp.ne.s32.totalorder %s31, %s32
      %p43 = scmp.eq.s32.totalorder %s23, 0
      %p44 = por %p42, %p43
      %p45 = scmp.ne.s32.totalorder %s31, %s32
      %p46 = scmp.eq.s32.totalorder %s24, 3
      %p47 = por %p45, %p46
      %p49 = scmp.ne.s32.totalorder %s32, %s48
      %p50 = scmp.eq.s32.totalorder %s24, 0
      %p51 = por %p49, %p50
      %s53 = sadd.s32 %s52, 1
      %p56 = scmp.eq.s32.totalorder %s18, 3
      %p57 = scmp.ne.s32.totalorder %s52, %s54
      %p58 = scmp.eq.s32.totalorder %s18, 0
      %p59 = por %p57, %p58
      %p60 = scmp.ne.s32.totalorder %s52, %s54
      %p61 = scmp.eq.s32.totalorder %s23, 3
      %p62 = por %p60, %p61
      %p63 = scmp.ne.s32.totalorder %s54, %s55
      %p64 = scmp.eq.s32.totalorder %s23, 0
      %p65 = por %p63, %p64
      %p66 = scmp.ne.s32.totalorder %s54, %s55
      %p67 = scmp.eq.s32.totalorder %s24, 3
      %p68 = por %p66, %p67
      %p70 = scmp.ne.s32.totalorder %s55, %s69
      %p71 = scmp.eq.s32.totalorder %s24, 0
      %p72 = por %p70, %p71
      %s74 = sadd.s32 %s73, 1
      %p77 = scmp.eq.s32.totalorder %s18, 3
      %p78 = scmp.ne.s32.totalorder %s73, %s75
      %p79 = scmp.eq.s32.totalorder %s18, 0
      %p80 = por %p78, %p79
      %p81 = scmp.ne.s32.totalorder %s73, %s75
      %p82 = scmp.eq.s32.totalorder %s23, 3
      %p83 = por %p81, %p82
      %p84 = scmp.ne.s32.totalorder %s75, %s76
      %p85 = scmp.eq.s32.totalorder %s23, 0
      %p86 = por %p84, %p85
      %p87 = scmp.ne.s32.totalorder %s75, %s76
      %p88 = scmp.eq.s32.totalorder %s24, 3
      %p89 = por %p87, %p88
      %p91 = scmp.ne.s32.totalorder %s76, %s90
      %p92 = scmp.eq.s32.totalorder %s24, 0
      %p93 = por %p91, %p92
      %s95 = sadd.s32 %s94, 1
      %p98 = scmp.eq.s32.totalorder %s18, 3
      %p99 = scmp.ne.s32.totalorder %s94, %s96
      %p100 = scmp.eq.s32.totalorder %s18, 0
      %p101 = por %p99, %p100
      %p102 = scmp.ne.s32.totalorder %s94, %s96
      %p103 = scmp.eq.s32.totalorder %s23, 3
      %p104 = por %p102, %p103
      %p105 = scmp.ne.s32.totalorder %s96, %s97
      %p106 = scmp.eq.s32.totalorder %s23, 0
      %p107 = por %p105, %p106
      %p108 = scmp.ne.s32.totalorder %s96, %s97
      %p109 = scmp.eq.s32.totalorder %s24, 3
      %p110 = por %p108, %p109
      %p112 = scmp.ne.s32.totalorder %s97, %s111
      %p113 = scmp.eq.s32.totalorder %s24, 0
      %p114 = por %p112, %p113
      %s116 = sadd.s32 %s115, 1
      %p119 = scmp.eq.s32.totalorder %s18, 3
      %p120 = scmp.ne.s32.totalorder %s115, %s117
      %p121 = scmp.eq.s32.totalorder %s18, 0
      %p122 = por %p120, %p121
      %p123 = scmp.ne.s32.totalorder %s115, %s117
      %p124 = scmp.eq.s32.totalorder %s23, 3
      %p125 = por %p123, %p124
      %p126 = scmp.ne.s32.totalorder %s117, %s118
      %p127 = scmp.eq.s32.totalorder %s23, 0
      %p128 = por %p126, %p127
      %p129 = scmp.ne.s32.totalorder %s117, %s118
      %p130 = scmp.eq.s32.totalorder %s24, 3
      %p131 = por %p129, %p130
      %p133 = scmp.ne.s32.totalorder %s118, %s132
      %p134 = scmp.eq.s32.totalorder %s24, 0
      %p135 = por %p133, %p134
      %s137 = sadd.s32 %s136, 1
      %p140 = scmp.eq.s32.totalorder %s18, 3
      %p141 = scmp.ne.s32.totalorder %s136, %s138
      %p142 = scmp.eq.s32.totalorder %s18, 0
      %p143 = por %p141, %p142
      %p144 = scmp.ne.s32.totalorder %s136, %s138
      %p145 = scmp.eq.s32.totalorder %s23, 3
      %p146 = por %p144, %p145
      %p147 = scmp.ne.s32.totalorder %s138, %s139
      %p148 = scmp.eq.s32.totalorder %s23, 0
      %p149 = por %p147, %p148
      %p150 = scmp.ne.s32.totalorder %s138, %s139
      %p151 = scmp.eq.s32.totalorder %s24, 3
      %p152 = por %p150, %p151
      %p154 = scmp.ne.s32.totalorder %s139, %s153
      %p155 = scmp.eq.s32.totalorder %s24, 0
      %p156 = por %p154, %p155
      %s158 = sadd.s32 %s157, 1
      %p161 = scmp.eq.s32.totalorder %s18, 3
      %p162 = scmp.ne.s32.totalorder %s157, %s159
      %p163 = scmp.eq.s32.totalorder %s18, 0
      %p164 = por %p162, %p163
      %p165 = scmp.ne.s32.totalorder %s157, %s159
      %p166 = scmp.eq.s32.totalorder %s23, 3
      %p167 = por %p165, %p166
      %p168 = scmp.ne.s32.totalorder %s159, %s160
      %p169 = scmp.eq.s32.totalorder %s23, 0
      %p170 = por %p168, %p169
      %p171 = scmp.ne.s32.totalorder %s159, %s160
      %p172 = scmp.eq.s32.totalorder %s24, 3
      %p173 = por %p171, %p172
      %p175 = scmp.ne.s32.totalorder %s160, %s174
      %p176 = scmp.eq.s32.totalorder %s24, 0
      %p177 = por %p175, %p176
      %s178 = ssub.s32 %s18, %s25
      %p179 = scmp.eq.s32.totalorder %s178, 0
      %s181 = sadd.s32 %s180, 1
      %s182 = scalar_select %p179, %s180, %s181
      %p185 = pneg %p179
      %p186 = scmp.eq.s32.totalorder %s18, 3
      %p187 = por %p185, %p186
      %p188 = scmp.ne.s32.totalorder %s180, %s183
      %p189 = scmp.eq.s32.totalorder %s18, 0
      %p190 = por %p188, %p189
      %p191 = scmp.ne.s32.totalorder %s180, %s183
      %p192 = scmp.eq.s32.totalorder %s23, 3
      %p193 = por %p191, %p192
      %p194 = scmp.ne.s32.totalorder %s183, %s184
      %p195 = scmp.eq.s32.totalorder %s23, 0
      %p196 = por %p194, %p195
      %p197 = scmp.ne.s32.totalorder %s183, %s184
      %p198 = scmp.eq.s32.totalorder %s24, 3
      %p199 = por %p197, %p198
      %p201 = scmp.ne.s32.totalorder %s184, %s200
      %p202 = scmp.eq.s32.totalorder %s24, 0
      %p203 = por %p201, %p202
      %p204 = scmp.le.s32.totalorder 1, %s18
      %p205 = scmp.lt.s32.totalorder %s18, 5
      %p206 = pnand %p204, %p205
      %p207 = pneg %p206
      // Predicated region
      $region9: #{tpu_custom_call.1} parent=5 // pred_check
        _
      $region10: #{tpu_custom_call.1} parent=5 // pred_check_branch
        %209 = sbr.rel (%p206) target = $region12
      $region11: #{tpu_custom_call.1} parent=5 // pred_region
        %s210 = ssub.s32 %s18, 1
        // Predicated region
        $region13: #{tpu_custom_call.1} parent=11 // pred_check
          %p211 = pneg %p65
        $region14: #{tpu_custom_call.1} parent=11 // pred_check_branch
          %213 = sbr.rel (%p211) target = $region16
        $region15: #{tpu_custom_call.1} parent=11 // pred_region
          _
        $region16: #{tpu_custom_call.1} parent=11 // pred_fallthru
          _
        // Predicated region
        $region17: #{tpu_custom_call.1} parent=11 // pred_check
          %p214 = pneg %p86
        $region18: #{tpu_custom_call.1} parent=11 // pred_check_branch
          %216 = sbr.rel (%p214) target = $region20
        $region19: #{tpu_custom_call.1} parent=11 // pred_region
          _
        $region20: #{tpu_custom_call.1} parent=11 // pred_fallthru
          _
        // Predicated region
        $region21: #{tpu_custom_call.1} parent=11 // pred_check
          %p217 = pneg %p107
        $region22: #{tpu_custom_call.1} parent=11 // pred_check_branch
          %219 = sbr.rel (%p217) target = $region24
        $region23: #{tpu_custom_call.1} parent=11 // pred_region
          _
        $region24: #{tpu_custom_call.1} parent=11 // pred_fallthru
          _
        // Predicated region
        $region25: #{tpu_custom_call.1} parent=11 // pred_check
          %p220 = pneg %p128
        $region26: #{tpu_custom_call.1} parent=11 // pred_check_branch
          %222 = sbr.rel (%p220) target = $region28
        $region27: #{tpu_custom_call.1} parent=11 // pred_region
          _
        $region28: #{tpu_custom_call.1} parent=11 // pred_fallthru
          _
        // Predicated region
        $region29: #{tpu_custom_call.1} parent=11 // pred_check
          %p223 = pneg %p149
        $region30: #{tpu_custom_call.1} parent=11 // pred_check_branch
          %225 = sbr.rel (%p223) target = $region32
        $region31: #{tpu_custom_call.1} parent=11 // pred_region
          _
        $region32: #{tpu_custom_call.1} parent=11 // pred_fallthru
          _
        // Predicated region
        $region33: #{tpu_custom_call.1} parent=11 // pred_check
          %p226 = pneg %p170
        $region34: #{tpu_custom_call.1} parent=11 // pred_check_branch
          %228 = sbr.rel (%p226) target = $region36
        $region35: #{tpu_custom_call.1} parent=11 // pred_region
          _
        $region36: #{tpu_custom_call.1} parent=11 // pred_fallthru
          _
      $region12: #{tpu_custom_call.1} parent=5 // pred_fallthru
        _
      %p229 = scmp.lt.s32.totalorder %s18, 4
      // Predicated region
      $region37: #{tpu_custom_call.1} parent=5 // pred_check
        %p230 = pneg %p229
      $region38: #{tpu_custom_call.1} parent=5 // pred_check_branch
        %232 = sbr.rel (%p230) target = $region40
      $region39: #{tpu_custom_call.1} parent=5 // pred_region
        // Predicated region
        $region41: #{tpu_custom_call.1} parent=39 // pred_check
          %p233 = pneg %p38
        $region42: #{tpu_custom_call.1} parent=39 // pred_check_branch
          %235 = sbr.rel (%p233) target = $region44
        $region43: #{tpu_custom_call.1} parent=39 // pred_region
          %s236 = smul.u32 2, %s18
          %p237 = scmp.lt.s32.totalorder %s236, 7
          %s238 = scalar_select %p237, %s236, 7
          %s239 = smul.addr %s238, 2
          %s240 = scalar_lea.vmem %s0, %s239
          %s241 = smul.u32 2, %s18
        $region44: #{tpu_custom_call.1} parent=39 // pred_fallthru
          _
      $region40: #{tpu_custom_call.1} parent=5 // pred_fallthru
        _
      %p242 = scmp.le.s32.totalorder 1, %s18
      %p243 = scmp.lt.s32.totalorder %s18, 5
      %p244 = pnand %p242, %p243
      %p245 = pneg %p244
      // Predicated region
      $region45: #{tpu_custom_call.1} parent=5 // pred_check
        _
      $region46: #{tpu_custom_call.1} parent=5 // pred_check_branch
        %247 = sbr.rel (%p244) target = $region48
      $region47: #{tpu_custom_call.1} parent=5 // pred_region
        %s248 = ssub.s32 %s18, 1
        %s249 = smul.u32 2, %s23
        %p250 = scmp.lt.s32.totalorder %s249, 7
        %s251 = scalar_select %p250, %s249, 7
        %s252 = smul.addr %s251, 2
        %s253 = scalar_lea.vmem %s0, %s252
        %p254 = pneg %p44
        %p255 = pneg %p41
        %p256 = pneg %p65
        %p257 = pneg %p62
        %p258 = pneg %p86
        %p259 = pneg %p83
        %p260 = pneg %p107
        %p261 = pneg %p104
        %p262 = pneg %p128
        %p263 = pneg %p125
        %p264 = pneg %p149
        %p265 = pneg %p146
        %p266 = pneg %p170
        %p267 = pneg %p167
        %p268 = pneg %p196
        %p269 = pneg %p193
        %s270 = sand.u32 %s183, 1
        %s271 = scalar_lea.sflag [#allocation4], %s270
        %s272 = sand.u32 %s183, 1
        %s273 = smul.addr %s272, 2
        %s274 = scalar_lea.vmem [#allocation3], %s273
        %s275 = smul.u32 2, %s23
        %p276 = scmp.lt.s32.totalorder %s275, 7
        %s277 = scalar_select %p276, %s275, 7
        %s278 = smul.addr %s277, 2
        %s279 = scalar_lea.vmem %s0, %s278
        %s280 = smul.u32 2, %s23
        %s281 = smul.u32 2, %s23
        %v282 = vld [vmem:[%s279] sm:$0xf]
        %v283 = vld [vmem:[%s1] sm:$0xff]
        %v284 = vld [vmem:[%s1 + $0x8] sm:$0xff]
        %v285 = vld [vmem:[%s1 + $0x10] sm:$0xff]
        %v286 = vld [vmem:[%s1 + $0x18] sm:$0xff]
        %v287 = vld [vmem:[%s1 + $0x20] sm:$0x7f]
        %289 = vset.pattern.permute.xlu0 0
        %290 = vperm.xlu0 %289, %v283
        %v291 = vpop.permute.xlu0 %290
        %294 = vset.pattern.permute.xlu0 0
        %295 = vperm.xlu0 %294, %v284
        %v296 = vpop.permute.xlu0 %295
        %299 = vset.pattern.permute.xlu0 0
        %300 = vperm.xlu0 %299, %v285
        %v301 = vpop.permute.xlu0 %300
        %304 = vset.pattern.permute.xlu0 0
        %305 = vperm.xlu0 %304, %v286
        %v306 = vpop.permute.xlu0 %305
        %309 = vset.pattern.permute.xlu0 0
        %310 = vperm.xlu0 %309, %v287
        %v311 = vpop.permute.xlu0 %310
        %v314 = vperm.slane %v282, 0
        %v315 = vperm.slane %v282, 2
        %v318 = vperm.slane %v314, 0
        %v319 = vperm.slane %v315, 0
        %v320 = vmul.f32 %v291, %v318
        %v321 = vmul.f32 %v291, %v319
        %v322 = vmul.f32 %v296, %v318
        %v323 = vmul.f32 %v296, %v319
        %v324 = vmul.f32 %v301, %v318
        %v325 = vmul.f32 %v301, %v319
        %v326 = vmul.f32 %v306, %v318
        %v327 = vmul.f32 %v306, %v319
        %v328 = vmul.f32 %v311, %v318
        %v329 = vmul.f32 %v311, %v319
        %330 = vset.pattern.permute.xlu0 1
        %331 = vperm.xlu0 %330, %v283
        %v332 = vpop.permute.xlu0 %331
        %334 = vset.pattern.permute.xlu0 1
        %335 = vperm.xlu0 %334, %v284
        %v336 = vpop.permute.xlu0 %335
        %338 = vset.pattern.permute.xlu0 1
        %339 = vperm.xlu0 %338, %v285
        %v340 = vpop.permute.xlu0 %339
        %342 = vset.pattern.permute.xlu0 1
        %343 = vperm.xlu0 %342, %v286
        %v344 = vpop.permute.xlu0 %343
        %346 = vset.pattern.permute.xlu0 1
        %347 = vperm.xlu0 %346, %v287
        %v348 = vpop.permute.xlu0 %347
        %v350 = vperm.slane %v282, 1
        %v351 = vperm.slane %v282, 3
        %v354 = vperm.slane %v350, 1
        %v355 = vperm.slane %v351, 1
        %v356 = vmul.f32 %v332, %v354
        %v357 = vmul.f32 %v332, %v355
        %v358 = vmul.f32 %v336, %v354
        %v359 = vmul.f32 %v336, %v355
        %v360 = vmul.f32 %v340, %v354
        %v361 = vmul.f32 %v340, %v355
        %v362 = vmul.f32 %v344, %v354
        %v363 = vmul.f32 %v344, %v355
        %v364 = vmul.f32 %v348, %v354
        %v365 = vmul.f32 %v348, %v355
        %v366 = vadd.f32 %v320, %v356
        %v367 = vadd.f32 %v321, %v357
        %v368 = vadd.f32 %v322, %v358
        %v369 = vadd.f32 %v323, %v359
        %v370 = vadd.f32 %v324, %v360
        %v371 = vadd.f32 %v325, %v361
        %v372 = vadd.f32 %v326, %v362
        %v373 = vadd.f32 %v327, %v363
        %v374 = vadd.f32 %v328, %v364
        %v375 = vadd.f32 %v329, %v365
        %v376 = vld [vmem:[%s2] sm:$0xff]
        %v377 = vld [vmem:[%s2 + $0x8] sm:$0xff]
        %v378 = vld [vmem:[%s2 + $0x10] sm:$0xff]
        %v379 = vld [vmem:[%s2 + $0x18] sm:$0xff]
        %v380 = vld [vmem:[%s2 + $0x20] sm:$0x7f]
        %382 = vset.pattern.permute.xlu0 0
        %383 = vperm.xlu0 %382, %v376
        %v384 = vpop.permute.xlu0 %383
        %387 = vset.pattern.permute.xlu0 0
        %388 = vperm.xlu0 %387, %v377
        %v389 = vpop.permute.xlu0 %388
        %392 = vset.pattern.permute.xlu0 0
        %393 = vperm.xlu0 %392, %v378
        %v394 = vpop.permute.xlu0 %393
        %397 = vset.pattern.permute.xlu0 0
        %398 = vperm.xlu0 %397, %v379
        %v399 = vpop.permute.xlu0 %398
        %402 = vset.pattern.permute.xlu0 0
        %403 = vperm.xlu0 %402, %v380
        %v404 = vpop.permute.xlu0 %403
        %v406 = vadd.f32 %v366, %v384
        %v407 = vadd.f32 %v367, %v384
        %v408 = vadd.f32 %v368, %v389
        %v409 = vadd.f32 %v369, %v389
        %v410 = vadd.f32 %v370, %v394
        %v411 = vadd.f32 %v371, %v394
        %v412 = vadd.f32 %v372, %v399
        %v413 = vadd.f32 %v373, %v399
        %v414 = vadd.f32 %v374, %v404
        %v415 = vadd.f32 %v375, %v404
        %v416 = vtanh.pop %v406
        %v417 = vtanh.pop %v407
        %v418 = vtanh.pop %v408
        %v419 = vtanh.pop %v409
        %v420 = vtanh.pop %v410
        %v421 = vtanh.pop %v411
        %v422 = vtanh.pop %v412
        %v423 = vtanh.pop %v413
        %v424 = vtanh.pop %v414
        %v425 = vtanh.pop %v415
        %v426 = vld [vmem:[%s3] sm:$0x1f]
        %v427 = vld [vmem:[%s4] sm:$0x1f]
        %429 = vset.pattern.permute.xlu0 0
        %430 = vperm.xlu0 %429, %v427
        %v431 = vpop.permute.xlu0 %430
        %vm433 = vcmask 318464
        %v435 = vsel %vm433, %v426, 0
        %vm437 = vcmask 1046528
        %v439 = vsel %vm437, %v424, 0
        %v442 = vsel %vm437, %v425, 0
        %444 = vmatpush.msra.mxu0 0.0
        %445 = vmatpush.msra.mxu0 0.0
        %446 = vmatpush.msra.mxu0 0.0
        %447 = vmatpush.msra.mxu0 0.0
        %448 = vmatpush.msra.mxu0 0.0
        %449 = vmatpush.msra.mxu0 0.0
        %450 = vmatpush.msra.mxu0 0.0
        %451 = vmatpush.msra.mxu0 0.0
        %452 = vmatpush.msra.mxu0 0.0
        %453 = vmatpush.msra.mxu0 0.0
        %454 = vmatpush.msra.mxu0 0.0
        %v455 = vand.u32 %v439, 4294901760
        %456 = vmatpush.msra.mxu0 %v455
        %v457 = vand.u32 %v422, 4294901760
        %458 = vmatpush.msra.mxu0 %v457
        %v459 = vand.u32 %v420, 4294901760
        %460 = vmatpush.msra.mxu0 %v459
        %v461 = vand.u32 %v418, 4294901760
        %462 = vmatpush.msra.mxu0 %v461
        %v463 = vand.u32 %v416, 4294901760
        %464 = vmatpush.msra.mxu0 %v463
        %v465 = vand.u32 %v435, 4294901760
        %v466 = vsub.f32 %v435, %v465
        %v467 = vand.u32 %v466, 4294901760
        %v468 = vsub.f32 %v466, %v467
        %v469 = vand.u32 %v468, 4294901760
        %470 = vmatmul.f32.gmra.mxu0 %v469
        %v471 = vpop.f32.mrf.mxu0
        %v472 = vadd.f32 %v431, %v471
        %473 = vdwg.mxu0
        %474 = vmatpush.msra.mxu0 0.0
        %475 = vmatpush.msra.mxu0 0.0
        %476 = vmatpush.msra.mxu0 0.0
        %477 = vmatpush.msra.mxu0 0.0
        %478 = vmatpush.msra.mxu0 0.0
        %479 = vmatpush.msra.mxu0 0.0
        %480 = vmatpush.msra.mxu0 0.0
        %481 = vmatpush.msra.mxu0 0.0
        %482 = vmatpush.msra.mxu0 0.0
        %483 = vmatpush.msra.mxu0 0.0
        %484 = vmatpush.msra.mxu0 0.0
        %v485 = vand.u32 %v439, 4294901760
        %v486 = vsub.f32 %v439, %v485
        %v487 = vand.u32 %v486, 4294901760
        %v488 = vsub.f32 %v486, %v487
        %v489 = vand.u32 %v488, 4294901760
        %490 = vmatpush.msra.mxu0 %v489
        %v491 = vand.u32 %v422, 4294901760
        %v492 = vsub.f32 %v422, %v491
        %v493 = vand.u32 %v492, 4294901760
        %v494 = vsub.f32 %v492, %v493
        %v495 = vand.u32 %v494, 4294901760
        %496 = vmatpush.msra.mxu0 %v495
        %v497 = vand.u32 %v420, 4294901760
        %v498 = vsub.f32 %v420, %v497
        %v499 = vand.u32 %v498, 4294901760
        %v500 = vsub.f32 %v498, %v499
        %v501 = vand.u32 %v500, 4294901760
        %502 = vmatpush.msra.mxu0 %v501
        %v503 = vand.u32 %v418, 4294901760
        %v504 = vsub.f32 %v418, %v503
        %v505 = vand.u32 %v504, 4294901760
        %v506 = vsub.f32 %v504, %v505
        %v507 = vand.u32 %v506, 4294901760
        %508 = vmatpush.msra.mxu0 %v507
        %v509 = vand.u32 %v416, 4294901760
        %v510 = vsub.f32 %v416, %v509
        %v511 = vand.u32 %v510, 4294901760
        %v512 = vsub.f32 %v510, %v511
        %v513 = vand.u32 %v512, 4294901760
        %514 = vmatpush.msra.mxu0 %v513
        %v515 = vand.u32 %v435, 4294901760
        %516 = vmatmul.f32.gmra.mxu0 %v515
        %v517 = vpop.f32.mrf.mxu0
        %v518 = vadd.f32 %v472, %v517
        %519 = vdwg.mxu0
        %520 = vmatpush.msra.mxu0 0.0
        %521 = vmatpush.msra.mxu0 0.0
        %522 = vmatpush.msra.mxu0 0.0
        %523 = vmatpush.msra.mxu0 0.0
        %524 = vmatpush.msra.mxu0 0.0
        %525 = vmatpush.msra.mxu0 0.0
        %526 = vmatpush.msra.mxu0 0.0
        %527 = vmatpush.msra.mxu0 0.0
        %528 = vmatpush.msra.mxu0 0.0
        %529 = vmatpush.msra.mxu0 0.0
        %530 = vmatpush.msra.mxu0 0.0
        %v531 = vand.u32 %v439, 4294901760
        %v532 = vsub.f32 %v439, %v531
        %533 = vmatpush.msra.mxu0 %v532
        %v534 = vand.u32 %v422, 4294901760
        %v535 = vsub.f32 %v422, %v534
        %536 = vmatpush.msra.mxu0 %v535
        %v537 = vand.u32 %v420, 4294901760
        %v538 = vsub.f32 %v420, %v537
        %539 = vmatpush.msra.mxu0 %v538
        %v540 = vand.u32 %v418, 4294901760
        %v541 = vsub.f32 %v418, %v540
        %542 = vmatpush.msra.mxu0 %v541
        %v543 = vand.u32 %v416, 4294901760
        %v544 = vsub.f32 %v416, %v543
        %545 = vmatpush.msra.mxu0 %v544
        %v546 = vand.u32 %v435, 4294901760
        %v547 = vsub.f32 %v435, %v546
        %548 = vmatmul.f32.gmra.mxu0 %v547
        %v549 = vpop.f32.mrf.mxu0
        %v550 = vadd.f32 %v518, %v549
        %551 = vdwg.mxu0
        %552 = vmatpush.msra.mxu0 0.0
        %553 = vmatpush.msra.mxu0 0.0
        %554 = vmatpush.msra.mxu0 0.0
        %555 = vmatpush.msra.mxu0 0.0
        %556 = vmatpush.msra.mxu0 0.0
        %557 = vmatpush.msra.mxu0 0.0
        %558 = vmatpush.msra.mxu0 0.0
        %559 = vmatpush.msra.mxu0 0.0
        %560 = vmatpush.msra.mxu0 0.0
        %561 = vmatpush.msra.mxu0 0.0
        %562 = vmatpush.msra.mxu0 0.0
        %v563 = vand.u32 %v439, 4294901760
        %564 = vmatpush.msra.mxu0 %v563
        %v565 = vand.u32 %v422, 4294901760
        %566 = vmatpush.msra.mxu0 %v565
        %v567 = vand.u32 %v420, 4294901760
        %568 = vmatpush.msra.mxu0 %v567
        %v569 = vand.u32 %v418, 4294901760
        %570 = vmatpush.msra.mxu0 %v569
        %v571 = vand.u32 %v416, 4294901760
        %572 = vmatpush.msra.mxu0 %v571
        %v573 = vand.u32 %v435, 4294901760
        %v574 = vsub.f32 %v435, %v573
        %v575 = vand.u32 %v574, 4294901760
        %576 = vmatmul.f32.gmra.mxu0 %v575
        %v577 = vpop.f32.mrf.mxu0
        %v578 = vadd.f32 %v550, %v577
        %579 = vdwg.mxu0
        %580 = vmatpush.msra.mxu0 0.0
        %581 = vmatpush.msra.mxu0 0.0
        %582 = vmatpush.msra.mxu0 0.0
        %583 = vmatpush.msra.mxu0 0.0
        %584 = vmatpush.msra.mxu0 0.0
        %585 = vmatpush.msra.mxu0 0.0
        %586 = vmatpush.msra.mxu0 0.0
        %587 = vmatpush.msra.mxu0 0.0
        %588 = vmatpush.msra.mxu0 0.0
        %589 = vmatpush.msra.mxu0 0.0
        %590 = vmatpush.msra.mxu0 0.0
        %v591 = vand.u32 %v439, 4294901760
        %v592 = vsub.f32 %v439, %v591
        %v593 = vand.u32 %v592, 4294901760
        %594 = vmatpush.msra.mxu0 %v593
        %v595 = vand.u32 %v422, 4294901760
        %v596 = vsub.f32 %v422, %v595
        %v597 = vand.u32 %v596, 4294901760
        %598 = vmatpush.msra.mxu0 %v597
        %v599 = vand.u32 %v420, 4294901760
        %v600 = vsub.f32 %v420, %v599
        %v601 = vand.u32 %v600, 4294901760
        %602 = vmatpush.msra.mxu0 %v601
        %v603 = vand.u32 %v418, 4294901760
        %v604 = vsub.f32 %v418, %v603
        %v605 = vand.u32 %v604, 4294901760
        %606 = vmatpush.msra.mxu0 %v605
        %v607 = vand.u32 %v416, 4294901760
        %v608 = vsub.f32 %v416, %v607
        %v609 = vand.u32 %v608, 4294901760
        %610 = vmatpush.msra.mxu0 %v609
        %v611 = vand.u32 %v435, 4294901760
        %612 = vmatmul.f32.gmra.mxu0 %v611
        %v613 = vpop.f32.mrf.mxu0
        %v614 = vadd.f32 %v578, %v613
        %615 = vdwg.mxu0
        %616 = vmatpush.msra.mxu0 0.0
        %617 = vmatpush.msra.mxu0 0.0
        %618 = vmatpush.msra.mxu0 0.0
        %619 = vmatpush.msra.mxu0 0.0
        %620 = vmatpush.msra.mxu0 0.0
        %621 = vmatpush.msra.mxu0 0.0
        %622 = vmatpush.msra.mxu0 0.0
        %623 = vmatpush.msra.mxu0 0.0
        %624 = vmatpush.msra.mxu0 0.0
        %625 = vmatpush.msra.mxu0 0.0
        %626 = vmatpush.msra.mxu0 0.0
        %v627 = vand.u32 %v439, 4294901760
        %628 = vmatpush.msra.mxu0 %v627
        %v629 = vand.u32 %v422, 4294901760
        %630 = vmatpush.msra.mxu0 %v629
        %v631 = vand.u32 %v420, 4294901760
        %632 = vmatpush.msra.mxu0 %v631
        %v633 = vand.u32 %v418, 4294901760
        %634 = vmatpush.msra.mxu0 %v633
        %v635 = vand.u32 %v416, 4294901760
        %636 = vmatpush.msra.mxu0 %v635
        %v637 = vand.u32 %v435, 4294901760
        %638 = vmatmul.f32.gmra.mxu0 %v637
        %v639 = vpop.f32.mrf.mxu0
        %v640 = vadd.f32 %v614, %v639
        %641 = vdwg.mxu0
        %642 = vmatpush.msra.mxu0 0.0
        %643 = vmatpush.msra.mxu0 0.0
        %644 = vmatpush.msra.mxu0 0.0
        %645 = vmatpush.msra.mxu0 0.0
        %646 = vmatpush.msra.mxu0 0.0
        %647 = vmatpush.msra.mxu0 0.0
        %648 = vmatpush.msra.mxu0 0.0
        %649 = vmatpush.msra.mxu0 0.0
        %650 = vmatpush.msra.mxu0 0.0
        %651 = vmatpush.msra.mxu0 0.0
        %652 = vmatpush.msra.mxu0 0.0
        %v653 = vand.u32 %v442, 4294901760
        %654 = vmatpush.msra.mxu0 %v653
        %v655 = vand.u32 %v423, 4294901760
        %656 = vmatpush.msra.mxu0 %v655
        %v657 = vand.u32 %v421, 4294901760
        %658 = vmatpush.msra.mxu0 %v657
        %v659 = vand.u32 %v419, 4294901760
        %660 = vmatpush.msra.mxu0 %v659
        %v661 = vand.u32 %v417, 4294901760
        %662 = vmatpush.msra.mxu0 %v661
        %v663 = vand.u32 %v435, 4294901760
        %v664 = vsub.f32 %v435, %v663
        %v665 = vand.u32 %v664, 4294901760
        %v666 = vsub.f32 %v664, %v665
        %v667 = vand.u32 %v666, 4294901760
        %668 = vmatmul.f32.gmra.mxu0 %v667
        %v669 = vpop.f32.mrf.mxu0
        %v670 = vadd.f32 %v431, %v669
        %671 = vdwg.mxu0
        %672 = vmatpush.msra.mxu0 0.0
        %673 = vmatpush.msra.mxu0 0.0
        %674 = vmatpush.msra.mxu0 0.0
        %675 = vmatpush.msra.mxu0 0.0
        %676 = vmatpush.msra.mxu0 0.0
        %677 = vmatpush.msra.mxu0 0.0
        %678 = vmatpush.msra.mxu0 0.0
        %679 = vmatpush.msra.mxu0 0.0
        %680 = vmatpush.msra.mxu0 0.0
        %681 = vmatpush.msra.mxu0 0.0
        %682 = vmatpush.msra.mxu0 0.0
        %v683 = vand.u32 %v442, 4294901760
        %v684 = vsub.f32 %v442, %v683
        %v685 = vand.u32 %v684, 4294901760
        %v686 = vsub.f32 %v684, %v685
        %v687 = vand.u32 %v686, 4294901760
        %688 = vmatpush.msra.mxu0 %v687
        %v689 = vand.u32 %v423, 4294901760
        %v690 = vsub.f32 %v423, %v689
        %v691 = vand.u32 %v690, 4294901760
        %v692 = vsub.f32 %v690, %v691
        %v693 = vand.u32 %v692, 4294901760
        %694 = vmatpush.msra.mxu0 %v693
        %v695 = vand.u32 %v421, 4294901760
        %v696 = vsub.f32 %v421, %v695
        %v697 = vand.u32 %v696, 4294901760
        %v698 = vsub.f32 %v696, %v697
        %v699 = vand.u32 %v698, 4294901760
        %700 = vmatpush.msra.mxu0 %v699
        %v701 = vand.u32 %v419, 4294901760
        %v702 = vsub.f32 %v419, %v701
        %v703 = vand.u32 %v702, 4294901760
        %v704 = vsub.f32 %v702, %v703
        %v705 = vand.u32 %v704, 4294901760
        %706 = vmatpush.msra.mxu0 %v705
        %v707 = vand.u32 %v417, 4294901760
        %v708 = vsub.f32 %v417, %v707
        %v709 = vand.u32 %v708, 4294901760
        %v710 = vsub.f32 %v708, %v709
        %v711 = vand.u32 %v710, 4294901760
        %712 = vmatpush.msra.mxu0 %v711
        %v713 = vand.u32 %v435, 4294901760
        %714 = vmatmul.f32.gmra.mxu0 %v713
        %v715 = vpop.f32.mrf.mxu0
        %v716 = vadd.f32 %v670, %v715
        %717 = vdwg.mxu0
        %718 = vmatpush.msra.mxu0 0.0
        %719 = vmatpush.msra.mxu0 0.0
        %720 = vmatpush.msra.mxu0 0.0
        %721 = vmatpush.msra.mxu0 0.0
        %722 = vmatpush.msra.mxu0 0.0
        %723 = vmatpush.msra.mxu0 0.0
        %724 = vmatpush.msra.mxu0 0.0
        %725 = vmatpush.msra.mxu0 0.0
        %726 = vmatpush.msra.mxu0 0.0
        %727 = vmatpush.msra.mxu0 0.0
        %728 = vmatpush.msra.mxu0 0.0
        %v729 = vand.u32 %v442, 4294901760
        %v730 = vsub.f32 %v442, %v729
        %731 = vmatpush.msra.mxu0 %v730
        %v732 = vand.u32 %v423, 4294901760
        %v733 = vsub.f32 %v423, %v732
        %734 = vmatpush.msra.mxu0 %v733
        %v735 = vand.u32 %v421, 4294901760
        %v736 = vsub.f32 %v421, %v735
        %737 = vmatpush.msra.mxu0 %v736
        %v738 = vand.u32 %v419, 4294901760
        %v739 = vsub.f32 %v419, %v738
        %740 = vmatpush.msra.mxu0 %v739
        %v741 = vand.u32 %v417, 4294901760
        %v742 = vsub.f32 %v417, %v741
        %743 = vmatpush.msra.mxu0 %v742
        %v744 = vand.u32 %v435, 4294901760
        %v745 = vsub.f32 %v435, %v744
        %746 = vmatmul.f32.gmra.mxu0 %v745
        %v747 = vpop.f32.mrf.mxu0
        %v748 = vadd.f32 %v716, %v747
        %749 = vdwg.mxu0
        %750 = vmatpush.msra.mxu0 0.0
        %751 = vmatpush.msra.mxu0 0.0
        %752 = vmatpush.msra.mxu0 0.0
        %753 = vmatpush.msra.mxu0 0.0
        %754 = vmatpush.msra.mxu0 0.0
        %755 = vmatpush.msra.mxu0 0.0
        %756 = vmatpush.msra.mxu0 0.0
        %757 = vmatpush.msra.mxu0 0.0
        %758 = vmatpush.msra.mxu0 0.0
        %759 = vmatpush.msra.mxu0 0.0
        %760 = vmatpush.msra.mxu0 0.0
        %v761 = vand.u32 %v442, 4294901760
        %762 = vmatpush.msra.mxu0 %v761
        %v763 = vand.u32 %v423, 4294901760
        %764 = vmatpush.msra.mxu0 %v763
        %v765 = vand.u32 %v421, 4294901760
        %766 = vmatpush.msra.mxu0 %v765
        %v767 = vand.u32 %v419, 4294901760
        %768 = vmatpush.msra.mxu0 %v767
        %v769 = vand.u32 %v417, 4294901760
        %770 = vmatpush.msra.mxu0 %v769
        %v771 = vand.u32 %v435, 4294901760
        %v772 = vsub.f32 %v435, %v771
        %v773 = vand.u32 %v772, 4294901760
        %774 = vmatmul.f32.gmra.mxu0 %v773
        %v775 = vpop.f32.mrf.mxu0
        %v776 = vadd.f32 %v748, %v775
        %777 = vdwg.mxu0
        %778 = vmatpush.msra.mxu0 0.0
        %779 = vmatpush.msra.mxu0 0.0
        %780 = vmatpush.msra.mxu0 0.0
        %781 = vmatpush.msra.mxu0 0.0
        %782 = vmatpush.msra.mxu0 0.0
        %783 = vmatpush.msra.mxu0 0.0
        %784 = vmatpush.msra.mxu0 0.0
        %785 = vmatpush.msra.mxu0 0.0
        %786 = vmatpush.msra.mxu0 0.0
        %787 = vmatpush.msra.mxu0 0.0
        %788 = vmatpush.msra.mxu0 0.0
        %v789 = vand.u32 %v442, 4294901760
        %v790 = vsub.f32 %v442, %v789
        %v791 = vand.u32 %v790, 4294901760
        %792 = vmatpush.msra.mxu0 %v791
        %v793 = vand.u32 %v423, 4294901760
        %v794 = vsub.f32 %v423, %v793
        %v795 = vand.u32 %v794, 4294901760
        %796 = vmatpush.msra.mxu0 %v795
        %v797 = vand.u32 %v421, 4294901760
        %v798 = vsub.f32 %v421, %v797
        %v799 = vand.u32 %v798, 4294901760
        %800 = vmatpush.msra.mxu0 %v799
        %v801 = vand.u32 %v419, 4294901760
        %v802 = vsub.f32 %v419, %v801
        %v803 = vand.u32 %v802, 4294901760
        %804 = vmatpush.msra.mxu0 %v803
        %v805 = vand.u32 %v417, 4294901760
        %v806 = vsub.f32 %v417, %v805
        %v807 = vand.u32 %v806, 4294901760
        %808 = vmatpush.msra.mxu0 %v807
        %v809 = vand.u32 %v435, 4294901760
        %810 = vmatmul.f32.gmra.mxu0 %v809
        %v811 = vpop.f32.mrf.mxu0
        %v812 = vadd.f32 %v776, %v811
        %813 = vdwg.mxu0
        %814 = vmatpush.msra.mxu0 0.0
        %815 = vmatpush.msra.mxu0 0.0
        %816 = vmatpush.msra.mxu0 0.0
        %817 = vmatpush.msra.mxu0 0.0
        %818 = vmatpush.msra.mxu0 0.0
        %819 = vmatpush.msra.mxu0 0.0
        %820 = vmatpush.msra.mxu0 0.0
        %821 = vmatpush.msra.mxu0 0.0
        %822 = vmatpush.msra.mxu0 0.0
        %823 = vmatpush.msra.mxu0 0.0
        %824 = vmatpush.msra.mxu0 0.0
        %v825 = vand.u32 %v442, 4294901760
        %826 = vmatpush.msra.mxu0 %v825
        %v827 = vand.u32 %v423, 4294901760
        %828 = vmatpush.msra.mxu0 %v827
        %v829 = vand.u32 %v421, 4294901760
        %830 = vmatpush.msra.mxu0 %v829
        %v831 = vand.u32 %v419, 4294901760
        %832 = vmatpush.msra.mxu0 %v831
        %v833 = vand.u32 %v417, 4294901760
        %834 = vmatpush.msra.mxu0 %v833
        %v835 = vand.u32 %v435, 4294901760
        %836 = vmatmul.f32.gmra.mxu0 %v835
        %v837 = vpop.f32.mrf.mxu0
        %v838 = vadd.f32 %v812, %v837
        %839 = vdwg.mxu0
        %v840 = vtanh.pop %v640
        %v841 = vtanh.pop %v838
        %v842 = vld [vmem:[%s5] sm:$0x1]
        %v843 = vld [vmem:[#allocation2] sm:$0x1]
        %845 = vset.pattern.permute.xlu0 0
        %846 = vperm.xlu0 %845, %v842
        %v847 = vpop.permute.xlu0 %846
        %v849 = vperm.slane %v847, 0
        %v850 = vmul.f32 %v849, %v840
        %v851 = vmul.f32 %v849, %v841
        %853 = vset.pattern.permute.xlu0 0
        %854 = vperm.xlu0 %853, %v843
        %v855 = vpop.permute.xlu0 %854
        %v857 = vperm.slane %v855, 0
        %v858 = vadd.f32 %v857, %v850
        %v859 = vadd.f32 %v857, %v851
        %860 = vset.pattern.permute.xlu0 1
        %861 = vperm.xlu0 %860, %v842
        %v862 = vpop.permute.xlu0 %861
        %v864 = vperm.slane %v862, 0
        %v865 = vmul.f32 %v864, %v840
        %v866 = vmul.f32 %v864, %v841
        %v869 = vrot.slane %v865, 1
        %v870 = vrot.slane %v866, 1
        %v873 = vadd.f32 %v858, %v869
        %v874 = vadd.f32 %v859, %v870
        %875 = vset.pattern.permute.xlu0 2
        %876 = vperm.xlu0 %875, %v842
        %v877 = vpop.permute.xlu0 %876
        %v879 = vperm.slane %v877, 0
        %v880 = vmul.f32 %v879, %v840
        %v881 = vmul.f32 %v879, %v841
        %v884 = vrot.slane %v880, 2
        %v885 = vrot.slane %v881, 2
        %v888 = vadd.f32 %v873, %v884
        %v889 = vadd.f32 %v874, %v885
        %890 = vset.pattern.permute.xlu0 3
        %891 = vperm.xlu0 %890, %v842
        %v892 = vpop.permute.xlu0 %891
        %v894 = vperm.slane %v892, 0
        %v895 = vmul.f32 %v894, %v840
        %v896 = vmul.f32 %v894, %v841
        %v899 = vrot.slane %v895, 3
        %v900 = vrot.slane %v896, 3
        %v903 = vadd.f32 %v888, %v899
        %v904 = vadd.f32 %v889, %v900
        %905 = vset.pattern.permute.xlu0 4
        %906 = vperm.xlu0 %905, %v842
        %v907 = vpop.permute.xlu0 %906
        %v909 = vperm.slane %v907, 0
        %v910 = vmul.f32 %v909, %v840
        %v911 = vmul.f32 %v909, %v841
        %v914 = vrot.slane %v910, 4
        %v915 = vrot.slane %v911, 4
        %v918 = vadd.f32 %v903, %v914
        %v919 = vadd.f32 %v904, %v915
        %v920 = vxor.u32 %v918, 2147483648
        %v921 = vxor.u32 %v919, 2147483648
        %v922 = vmul.f32 %v920, 1.442695
        %v923 = vpow.pop %v922
        %v924 = vmul.f32 %v921, 1.442695
        %v925 = vpow.pop %v924
        %v926 = vadd.f32 %v923, 1.0
        %v927 = vadd.f32 %v925, 1.0
        %v928 = vrcp.pop %v926
        %v929 = vmul.f32 %v926, %v928
        %v930 = vsub.f32 1.0, %v929
        %v931 = vmul.f32 %v928, %v930
        %v932 = vadd.f32 %v928, %v931
        %vm933 = vweird.f32 %v926
        %vm934 = vweird.f32 %v928
        %vm935 = vmor %vm933, %vm934
        %v936 = vsel %vm935, %v928, %v932
        %v937 = vand.u32 2147483647, %v926
        %vm938 = vcmp.eq.f32.partialorder %v937, 8.507059e+37
        %v939 = vand.u32 %v926, 2147483648
        %v940 = vor.u32 1.1754944e-38, %v939
        %v941 = vsel %vm938, %v940, %v936
        %v942 = vmul.f32 1.0, %v941
        %v943 = vrcp.pop %v927
        %v944 = vmul.f32 %v927, %v943
        %v945 = vsub.f32 1.0, %v944
        %v946 = vmul.f32 %v943, %v945
        %v947 = vadd.f32 %v943, %v946
        %vm948 = vweird.f32 %v927
        %vm949 = vweird.f32 %v943
        %vm950 = vmor %vm948, %vm949
        %v951 = vsel %vm950, %v943, %v947
        %v952 = vand.u32 2147483647, %v927
        %vm953 = vcmp.eq.f32.partialorder %v952, 8.507059e+37
        %v954 = vand.u32 %v927, 2147483648
        %v955 = vor.u32 1.1754944e-38, %v954
        %v956 = vsel %vm953, %v955, %v951
        %v957 = vmul.f32 1.0, %v956
        %v960 = vrot.slane %v957, 7
        %vm961 = vcmask 1040384
        %v962 = vsel %vm961, %v942, %v960
        %v964 = vlaneseq
        %vm965 = vcmp.ge.s32.totalorder %v964, 0
        %vm966 = vcmp.lt.s32.totalorder %v964, 256
        %vm967 = vmand %vm965, %vm966
        %968 = vst.msk [vmem:[%s274] sm:$0x3] %vm967, %v962
        %s969 = sand.u32 %s183, 1
        %s970 = scalar_lea.sflag [#allocation4], %s969
        %s971 = sand.u32 %s183, 1
        %s972 = smul.addr %s971, 2
        %s973 = scalar_lea.vmem [#allocation3], %s972
        // Predicated region
        $region49: #{tpu_custom_call.1} parent=47 // pred_check
          %p974 = pneg %p193
        $region50: #{tpu_custom_call.1} parent=47 // pred_check_branch
          %976 = sbr.rel (%p974) target = $region52
        $region51: #{tpu_custom_call.1} parent=47 // pred_region
          %s977 = smul.u32 2, %s23
          %979 = vsyncadd %s970, 0
          %s980 = scalar_lea.hbm %s7, %s977
          %s982 = sshll.u32 %s973, 4
          %s983 = int_to_ptr.vmem [resolvable:$true] %s982
          %s984 = sshll.u32 %s980, 4
          %s985 = int_to_ptr.hbm [resolvable:$true] %s984
          %987 = dma.vmem_to_hbm [thread:$0]  %s983, 32, %s985, %s970
        $region52: #{tpu_custom_call.1} parent=47 // pred_fallthru
          _
      $region48: #{tpu_custom_call.1} parent=5 // pred_fallthru
        _
      %p988 = scmp.le.s32.totalorder 2, %s18
      // Predicated region
      $region53: #{tpu_custom_call.1} parent=5 // pred_check
        %p989 = pneg %p988
      $region54: #{tpu_custom_call.1} parent=5 // pred_check_branch
        %991 = sbr.rel (%p989) target = $region56
      $region55: #{tpu_custom_call.1} parent=5 // pred_region
        %s992 = ssub.s32 %s18, 2
        // Predicated region
        $region57: #{tpu_custom_call.1} parent=55 // pred_check
          %p993 = pneg %p199
        $region58: #{tpu_custom_call.1} parent=55 // pred_check_branch
          %995 = sbr.rel (%p993) target = $region60
        $region59: #{tpu_custom_call.1} parent=55 // pred_region
          %s996 = sand.u32 %s184, 1
          %s997 = scalar_lea.sflag [#allocation4], %s996
          %s998 = sand.u32 %s184, 1
          %s999 = smul.addr %s998, 2
          %s1000 = scalar_lea.vmem [#allocation3], %s999
          %1002 = dma.done %s997, 32
        $region60: #{tpu_custom_call.1} parent=55 // pred_fallthru
          _
      $region56: #{tpu_custom_call.1} parent=5 // pred_fallthru
        _
    $region6: #{tpu_custom_call.1} parent=1 // loop_footer
      %s22 = sadd.s32 1, %s18
    $region7: #{tpu_custom_call.1} parent=1 // loop_footer_branch
      %17 = sbr.rel target = $region3
    $region8: #{tpu_custom_call.1} parent=1 // loop_exit
      _
    %1003 = vsyncpa [#allocation4], 1
    %s1004 = scalar_lea.sflag [#allocation4], 1
    %1005 = vsyncpa %s1004, 1

</llo_original>
